<compile_context>
chip_gen: v7x
topology: tpu7x:2x2x1
jax: 0.10.0
libtpu: 0.0.40
codegen_flags: <defaults>
</compile_context>

<pallas_src>
import functools

import jax
import jax.numpy as jnp
from jax import lax
from jax.experimental import pallas as pl
from jax.experimental.pallas import tpu as pltpu

EPS = 1e-5
LANE = 128
MAX_TILE_M = 512                      # keeps double-buffered tiles well inside v7x VMEM
VMEM_LIMIT = 32 * 1024 * 1024


# ---------------------------------------------------------------------------
# Pallas kernels
# ---------------------------------------------------------------------------
def _matmul_stats_kernel(x_ref, w_ref, y_ref, sum_ref, sq_ref):
    """Pass 1: bf16 matmul (f32 accum) + per-channel sum / sum-of-squares.

    sum_ref / sq_ref are (1, C) outputs kept resident across the (arbitrary)
    M grid axis; zero-padded rows contribute nothing, so dividing by the true
    row count in the wrapper gives exact batch statistics.
    """
    y = jnp.dot(x_ref[...], w_ref[...], preferred_element_type=jnp.float32)
    y_ref[...] = y

    @pl.when(pl.program_id(0) == 0)
    def _():
        sum_ref[...] = jnp.zeros_like(sum_ref)
        sq_ref[...] = jnp.zeros_like(sq_ref)

    sum_ref[...] += jnp.sum(y, axis=0, keepdims=True)
    sq_ref[...] += jnp.sum(y * y, axis=0, keepdims=True)


def _bn_relu_kernel(y_ref, scale_ref, shift_ref, out_ref):
    """Pass 2 (conv1 branch): folded BN (y*scale+shift) + ReLU, bf16 output."""
    a = y_ref[...] * scale_ref[...] + shift_ref[...]
    out_ref[...] = jnp.maximum(a, 0.0).astype(out_ref.dtype)


def _bn_shortcut_add_relu_kernel(y_ref, scale_ref, shift_ref,
                                 xs_ref, w3_ref, b3_ref, out_ref):
    """Pass 2 (conv2 branch, 1x1-conv shortcut fused): BN + Wx+b + add + ReLU."""
    bn = y_ref[...] * scale_ref[...] + shift_ref[...]
    sc = jnp.dot(xs_ref[...], w3_ref[...],
                 preferred_element_type=jnp.float32) + b3_ref[...]
    out_ref[...] = jnp.maximum(bn + sc, 0.0)


def _bn_add_relu_kernel(y_ref, scale_ref, shift_ref, res_ref, out_ref):
    """Pass 2 (conv2 branch, identity shortcut): BN + residual add + ReLU."""
    out_ref[...] = jnp.maximum(
        y_ref[...] * scale_ref[...] + shift_ref[...] + res_ref[...], 0.0)


# ---------------------------------------------------------------------------
# pallas_call wrappers (gridded over M tiles)
# ---------------------------------------------------------------------------
def _matmul_stats(x, w, tile_m):
    mp, k = x.shape
    c = w.shape[1]
    return pl.pallas_call(
        _matmul_stats_kernel,
        out_shape=(jax.ShapeDtypeStruct((mp, c), jnp.float32),
                   jax.ShapeDtypeStruct((1, c), jnp.float32),
                   jax.ShapeDtypeStruct((1, c), jnp.float32)),
        grid=(mp // tile_m,),
        in_specs=[pl.BlockSpec((tile_m, k), lambda i: (i, 0)),
                  pl.BlockSpec((k, c), lambda i: (0, 0))],
        out_specs=(pl.BlockSpec((tile_m, c), lambda i: (i, 0)),
                   pl.BlockSpec((1, c), lambda i: (0, 0)),
                   pl.BlockSpec((1, c), lambda i: (0, 0))),
        compiler_params=pltpu.CompilerParams(
            dimension_semantics=("arbitrary",),      # stats accumulate over M
            vmem_limit_bytes=VMEM_LIMIT),
    )(x, w)


def _bn_relu(y, scale, shift, tile_m):
    mp, c = y.shape
    return pl.pallas_call(
        _bn_relu_kernel,
        out_shape=jax.ShapeDtypeStruct((mp, c), jnp.bfloat16),
        grid=(mp // tile_m,),
        in_specs=[pl.BlockSpec((tile_m, c), lambda i: (i, 0)),
                  pl.BlockSpec((1, c), lambda i: (0, 0)),
                  pl.BlockSpec((1, c), lambda i: (0, 0))],
        out_specs=pl.BlockSpec((tile_m, c), lambda i: (i, 0)),
        compiler_params=pltpu.CompilerParams(
            dimension_semantics=("parallel",),
            vmem_limit_bytes=VMEM_LIMIT),
    )(y, scale, shift)


def _bn_shortcut_add_relu(y, scale, shift, xs, w3, b3, tile_m):
    mp, c = y.shape
    kin = xs.shape[1]
    return pl.pallas_call(
        _bn_shortcut_add_relu_kernel,
        out_shape=jax.ShapeDtypeStruct((mp, c), jnp.float32),
        grid=(mp // tile_m,),
        in_specs=[pl.BlockSpec((tile_m, c), lambda i: (i, 0)),
                  pl.BlockSpec((1, c), lambda i: (0, 0)),
                  pl.BlockSpec((1, c), lambda i: (0, 0)),
                  pl.BlockSpec((tile_m, kin), lambda i: (i, 0)),
                  pl.BlockSpec((kin, c), lambda i: (0, 0)),
                  pl.BlockSpec((1, c), lambda i: (0, 0))],
        out_specs=pl.BlockSpec((tile_m, c), lambda i: (i, 0)),
        compiler_params=pltpu.CompilerParams(
            dimension_semantics=("parallel",),
            vmem_limit_bytes=VMEM_LIMIT),
    )(y, scale, shift, xs, w3, b3)


def _bn_add_relu(y, scale, shift, res, tile_m):
    mp, c = y.shape
    return pl.pallas_call(
        _bn_add_relu_kernel,
        out_shape=jax.ShapeDtypeStruct((mp, c), jnp.float32),
        grid=(mp // tile_m,),
        in_specs=[pl.BlockSpec((tile_m, c), lambda i: (i, 0)),
                  pl.BlockSpec((1, c), lambda i: (0, 0)),
                  pl.BlockSpec((1, c), lambda i: (0, 0)),
                  pl.BlockSpec((tile_m, c), lambda i: (i, 0))],
        out_specs=pl.BlockSpec((tile_m, c), lambda i: (i, 0)),
        compiler_params=pltpu.CompilerParams(
            dimension_semantics=("parallel",),
            vmem_limit_bytes=VMEM_LIMIT),
    )(y, scale, shift, res)


# ---------------------------------------------------------------------------
# Glue helpers (plain JAX)
# ---------------------------------------------------------------------------
def _round_up(x, m):
    return ((x + m - 1) // m) * m


def _pick_tile_m(m):
    return min(MAX_TILE_M, _round_up(m, 8))


def _pad2d(x, rows, cols):
    r = rows - x.shape[0]
    c = cols - x.shape[1]
    if r == 0 and c == 0:
        return x
    return jnp.pad(x, ((0, r), (0, c)))


def im2col_3x3(x_nhwc, stride, pad=1):
    n, h, w, c = x_nhwc.shape
    xp = jnp.pad(x_nhwc, ((0, 0), (pad, pad), (pad, pad), (0, 0)))
    ho = (h + 2 * pad - 3) // stride + 1
    wo = (w + 2 * pad - 3) // stride + 1
    taps = []
    for kh in range(3):
        for kw in range(3):
            taps.append(xp[:, kh:kh + stride * ho:stride,
                           kw:kw + stride * wo:stride, :])
    p = jnp.stack(taps, axis=3)                    # (n, ho, wo, 9, c)
    return p.reshape(n * ho * wo, 9 * c), (n, ho, wo)


def _conv3x3_bn_stats(x_nhwc, w_hwio, gamma, beta, stride, cpad):
    """3x3 conv (im2col + pass-1 kernel) and folded BN (scale, shift)."""
    cout = w_hwio.shape[-1]
    patches, (n, ho, wo) = im2col_3x3(x_nhwc.astype(jnp.bfloat16), stride)
    m = n * ho * wo
    kdim = _round_up(patches.shape[1], LANE)
    tile_m = _pick_tile_m(m)
    mp = _round_up(m, tile_m)
    patches = _pad2d(patches, mp, kdim)
    w2d = _pad2d(w_hwio.reshape(-1, cout).astype(jnp.bfloat16), kdim, cpad)

    y, s, q = _matmul_stats(patches, w2d, tile_m)
    mean = s / m
    var = jnp.maximum(q / m - mean * mean, 0.0)    # biased batch variance
    g = _pad2d(gamma.astype(jnp.float32), 1, cpad)
    b = _pad2d(beta.astype(jnp.float32), 1, cpad)
    scale = g * lax.rsqrt(var + EPS)
    shift = b - mean * scale
    return y, scale, shift, (n, ho, wo), m, tile_m


# ---------------------------------------------------------------------------
# Residual module forward
# ---------------------------------------------------------------------------
def init_residual_params(key, input_channels, num_channels, use_1x1conv):
    ks = jax.random.split(key, 10)
    sc = 0.1
    params = {
        "w1": sc * jax.random.normal(ks[0], (3, 3, input_channels, num_channels), jnp.float32),
        "b1": sc * jax.random.normal(ks[1], (1, num_channels), jnp.float32),
        "w2": sc * jax.random.normal(ks[2], (3, 3, num_channels, num_channels), jnp.float32),
        "b2": sc * jax.random.normal(ks[3], (1, num_channels), jnp.float32),
        # BN affine params (PyTorch init is weight=1 / bias=0; randomized a bit
        # here so the affine path is actually exercised by the test).
        "g1": 1.0 + sc * jax.random.normal(ks[4], (1, num_channels), jnp.float32),
        "be1": sc * jax.random.normal(ks[5], (1, num_channels), jnp.float32),
        "g2": 1.0 + sc * jax.random.normal(ks[6], (1, num_channels), jnp.float32),
        "be2": sc * jax.random.normal(ks[7], (1, num_channels), jnp.float32),
    }
    if use_1x1conv:
        params["w3"] = sc * jax.random.normal(ks[8], (input_channels, num_channels), jnp.float32)
        params["b3"] = sc * jax.random.normal(ks[9], (1, num_channels), jnp.float32)
    return params


@functools.partial(jax.jit, static_argnames=("use_1x1conv", "strides"))
def residual_forward(x_nchw, params, *, use_1x1conv=False, strides=1):
    # NCHW (PyTorch) -> NHWC (TPU friendly)
    x = jnp.transpose(x_nchw, (0, 2, 3, 1)).astype(jnp.float32)
    cin = x.shape[-1]
    cout = params["w1"].shape[-1]
    cpad = _round_up(cout, LANE)

    if not use_1x1conv and (cin != cout or strides != 1):
        raise ValueError(
            "identity shortcut requires input_channels == num_channels and strides == 1")

    # conv1 + bn1 stats (bias b1 dropped: exactly cancelled by mean subtraction)
    y1, scale1, shift1, (n, ho, wo), m, tile_m = _conv3x3_bn_stats(
        x, params["w1"], params["g1"], params["be1"], strides, cpad)

    # bn1 apply + ReLU (lane-dense bf16 activations for the next matmul)
    a1 = _bn_relu(y1, scale1, shift1, tile_m)
    a1 = a1[:m, :cout].reshape(n, ho, wo, cout)

    # conv2 + bn2 stats (bias b2 dropped, same reason)
    y2, scale2, shift2, _, m2, tile_m2 = _conv3x3_bn_stats(
        a1, params["w2"], params["g2"], params["be2"], 1, cpad)
    mp2 = y2.shape[0]

    # bn2 apply + shortcut + add + ReLU, fused in a single pass-2 kernel
    if use_1x1conv:
        kin = _round_up(cin, LANE)
        xs = x[:, ::strides, ::strides, :].reshape(m2, cin).astype(jnp.bfloat16)
        xs = _pad2d(xs, mp2, kin)
        w3 = _pad2d(params["w3"].astype(jnp.bfloat16), kin, cpad)
        b3 = _pad2d(params["b3"].astype(jnp.float32), 1, cpad)
        out = _bn_shortcut_add_relu(y2, scale2, shift2, xs, w3, b3, tile_m2)
    else:
        res = _pad2d(x.reshape(m2, cin), mp2, cpad)
        out = _bn_add_relu(y2, scale2, shift2, res, tile_m2)

    out = out[:m2, :cout].reshape(n, ho, wo, cout)
    return jnp.transpose(out, (0, 3, 1, 2))        # back to NCHW


# ---------------------------------------------------------------------------
# Pure-JAX reference (mirrors the PyTorch forward; bf16 matmul inputs with f32
# accumulation to match the kernel's intentional precision choices)
# ---------------------------------------------------------------------------
def residual_reference(x_nchw, params, *, use_1x1conv=False, strides=1):
    x = jnp.transpose(x_nchw, (0, 2, 3, 1)).astype(jnp.float32)

    def conv3x3(inp, w, s):
        return lax.conv_general_dilated(
            inp.astype(jnp.bfloat16), w.astype(jnp.bfloat16), (s, s),
            ((1, 1), (1, 1)), dimension_numbers=("NHWC", "HWIO", "NHWC"),
            preferred_element_type=jnp.float32)

    def bn(y, g, be):
        mu = y.mean(axis=(0, 1, 2), keepdims=True)
        var = ((y - mu) ** 2).mean(axis=(0, 1, 2), keepdims=True)
        return (g.reshape(1, 1, 1, -1) * (y - mu) * lax.rsqrt(var + EPS)
                + be.reshape(1, 1, 1, -1))

    y1 = conv3x3(x, params["w1"], strides) + params["b1"].reshape(1, 1, 1, -1)
    a1 = jax.nn.relu(bn(y1, params["g1"], params["be1"]))
    y2 = conv3x3(a1, params["w2"], 1) + params["b2"].reshape(1, 1, 1, -1)
    yy = bn(y2, params["g2"], params["be2"])
    if use_1x1conv:
        w3 = params["w3"].reshape(1, 1, *params["w3"].shape)
        xr = lax.conv_general_dilated(
            x.astype(jnp.bfloat16), w3.astype(jnp.bfloat16),
            (strides, strides), "VALID",
            dimension_numbers=("NHWC", "HWIO", "NHWC"),
            preferred_element_type=jnp.float32)
        xr = xr + params["b3"].reshape(1, 1, 1, -1)
    else:
        xr = x
    return jnp.transpose(jax.nn.relu(yy + xr), (0, 3, 1, 2))


# ---------------------------------------------------------------------------
if __name__ == "__main__":
    key = jax.random.PRNGKey(0)
    k_xa, k_pa, k_xb, k_pb = jax.random.split(key, 4)

    # Tolerance: matmul operands are intentionally bf16 (MXU throughput / HBM
    # bytes), and the intermediate activation is stored in bf16, so kernel vs.
    # reference can differ at the ~1e-2 level; structural bugs would be O(1).
    TOL = 2e-2

    # Config A: channel change + stride 2 + 1x1-conv shortcut
    n, cin, h, w = 2, 4, 16, 16
    cout, strides = 8, 2
    xa = jax.random.normal(k_xa, (n, cin, h, w), jnp.float32)
    pa = init_residual_params(k_pa, cin, cout, use_1x1conv=True)
    out_a = jax.block_until_ready(
        residual_forward(xa, pa, use_1x1conv=True, strides=strides))
    ref_a = residual_reference(xa, pa, use_1x1conv=True, strides=strides)
    assert out_a.shape == (n, cout, h // strides, w // strides), out_a.shape
    assert jnp.allclose(out_a, ref_a, rtol=TOL, atol=TOL), \
        float(jnp.max(jnp.abs(out_a - ref_a)))

    # Config B: identity shortcut (Cin == Cout, stride 1)
    c2 = 8
    xb = jax.random.normal(k_xb, (n, c2, h, w), jnp.float32)
    pb = init_residual_params(k_pb, c2, c2, use_1x1conv=False)
    out_b = jax.block_until_ready(
        residual_forward(xb, pb, use_1x1conv=False, strides=1))
    ref_b = residual_reference(xb, pb, use_1x1conv=False, strides=1)
    assert out_b.shape == (n, c2, h, w), out_b.shape
    assert jnp.allclose(out_b, ref_b, rtol=TOL, atol=TOL), \
        float(jnp.max(jnp.abs(out_b - ref_b)))

    print("KERNEL_OK")
</pallas_src>

<mosaic_0001>
module attributes {stable_mosaic.version = 11 : i64} {
  func.func @_matmul_stats_kernel(%arg0: i32, %arg1: memref<128x128xbf16, #tpu.memory_space<vmem>>, %arg2: memref<128x128xbf16, #tpu.memory_space<vmem>>, %arg3: memref<128x128xf32, #tpu.memory_space<vmem>>, %arg4: memref<1x128xf32, #tpu.memory_space<vmem>>, %arg5: memref<1x128xf32, #tpu.memory_space<vmem>>) attributes {dimension_semantics = [#tpu.dimension_semantics<arbitrary>], iteration_bounds = array<i64: 1>, scalar_prefetch = 0 : i64, scratch_operands = 0 : i64, tpu.core_type = #tpu.core_type<tc>, window_params = [{transform_indices = @transform_0, window_bounds = array<i64: 128, 128>}, {pipeline_mode = #tpu.pipeline_mode<synchronous>, transform_indices = @transform_1, window_bounds = array<i64: 128, 128>}, {transform_indices = @transform_2, window_bounds = array<i64: 128, 128>}, {pipeline_mode = #tpu.pipeline_mode<synchronous>, transform_indices = @transform_3, window_bounds = array<i64: 1, 128>}, {pipeline_mode = #tpu.pipeline_mode<synchronous>, transform_indices = @transform_4, window_bounds = array<i64: 1, 128>}]} {
    %c0 = arith.constant 0 : index
    %c0_0 = arith.constant 0 : index
    %0 = vector.load %arg1[%c0, %c0_0] : memref<128x128xbf16, #tpu.memory_space<vmem>>, vector<128x128xbf16>
    %c0_1 = arith.constant 0 : index
    %c0_2 = arith.constant 0 : index
    %1 = vector.load %arg2[%c0_1, %c0_2] : memref<128x128xbf16, #tpu.memory_space<vmem>>, vector<128x128xbf16>
    %cst = arith.constant dense<0.000000e+00> : vector<128x128xf32>
    %2 = tpu.matmul %0, %1, %cst {dimension_numbers = #tpu.dot_dimension_numbers<[1], [0], [0], [1], [0, 0, 1, 1], [], []>} : vector<128x128xbf16>, vector<128x128xbf16>, vector<128x128xf32> -> vector<128x128xf32>
    %c0_3 = arith.constant 0 : index
    %c0_4 = arith.constant 0 : index
    %3 = vector.load %arg3[%c0_3, %c0_4] : memref<128x128xf32, #tpu.memory_space<vmem>>, vector<128x128xf32>
    tpu.vector_store %arg3[%c0_3, %c0_4], %2 {strides = array<i32>} : memref<128x128xf32, #tpu.memory_space<vmem>>, vector<128x128xf32>,
    %c0_i32 = arith.constant 0 : i32
    %4 = arith.cmpi eq, %arg0, %c0_i32 : i32
    %5 = arith.extui %4 : i1 to i32
    %c0_i32_5 = arith.constant 0 : i32
    %6 = arith.cmpi ne, %5, %c0_i32_5 : i32
    scf.if %6 {
      %cst_16 = arith.constant 0.000000e+00 : f32
      %18 = vector.broadcast %cst_16 : f32 to vector<1x128xf32>
      %c0_17 = arith.constant 0 : index
      %c0_18 = arith.constant 0 : index
      %19 = vector.load %arg4[%c0_17, %c0_18] : memref<1x128xf32, #tpu.memory_space<vmem>>, vector<1x128xf32>
      tpu.vector_store %arg4[%c0_17, %c0_18], %18 {strides = array<i32>} : memref<1x128xf32, #tpu.memory_space<vmem>>, vector<1x128xf32>,
      %cst_19 = arith.constant 0.000000e+00 : f32
      %20 = vector.broadcast %cst_19 : f32 to vector<1x128xf32>
      %c0_20 = arith.constant 0 : index
      %c0_21 = arith.constant 0 : index
      %21 = vector.load %arg5[%c0_20, %c0_21] : memref<1x128xf32, #tpu.memory_space<vmem>>, vector<1x128xf32>
      tpu.vector_store %arg5[%c0_20, %c0_21], %20 {strides = array<i32>} : memref<1x128xf32, #tpu.memory_space<vmem>>, vector<1x128xf32>,
    } else {
    }
    %c0_6 = arith.constant 0 : index
    %c0_7 = arith.constant 0 : index
    %7 = vector.load %arg4[%c0_6, %c0_7] : memref<1x128xf32, #tpu.memory_space<vmem>>, vector<1x128xf32>
    %cst_8 = arith.constant dense<0.000000e+00> : vector<128xf32>
    %8 = vector.multi_reduction <add>, %2, %cst_8 [0] : vector<128x128xf32> to vector<128xf32>
    %9 = vector.shape_cast %8 : vector<128xf32> to vector<1x128xf32>
    %10 = arith.addf %7, %9 : vector<1x128xf32>
    %c0_9 = arith.constant 0 : index
    %c0_10 = arith.constant 0 : index
    %11 = vector.load %arg4[%c0_9, %c0_10] : memref<1x128xf32, #tpu.memory_space<vmem>>, vector<1x128xf32>
    tpu.vector_store %arg4[%c0_9, %c0_10], %10 {strides = array<i32>} : memref<1x128xf32, #tpu.memory_space<vmem>>, vector<1x128xf32>,
    %c0_11 = arith.constant 0 : index
    %c0_12 = arith.constant 0 : index
    %12 = vector.load %arg5[%c0_11, %c0_12] : memref<1x128xf32, #tpu.memory_space<vmem>>, vector<1x128xf32>
    %13 = arith.mulf %2, %2 : vector<128x128xf32>
    %cst_13 = arith.constant dense<0.000000e+00> : vector<128xf32>
    %14 = vector.multi_reduction <add>, %13, %cst_13 [0] : vector<128x128xf32> to vector<128xf32>
    %15 = vector.shape_cast %14 : vector<128xf32> to vector<1x128xf32>
    %16 = arith.addf %12, %15 : vector<1x128xf32>
    %c0_14 = arith.constant 0 : index
    %c0_15 = arith.constant 0 : index
    %17 = vector.load %arg5[%c0_14, %c0_15] : memref<1x128xf32, #tpu.memory_space<vmem>>, vector<1x128xf32>
    tpu.vector_store %arg5[%c0_14, %c0_15], %16 {strides = array<i32>} : memref<1x128xf32, #tpu.memory_space<vmem>>, vector<1x128xf32>,
    return
  }
  func.func @transform_0(%arg0: i32) -> (i32, i32) {
    %c0_i32 = arith.constant 0 : i32
    %c0_i32_0 = arith.constant 0 : i32
    return %arg0, %c0_i32 : i32, i32
  }
  func.func @transform_1(%arg0: i32) -> (i32, i32) {
    %c0_i32 = arith.constant 0 : i32
    %c0_i32_0 = arith.constant 0 : i32
    %c0_i32_1 = arith.constant 0 : i32
    return %c0_i32, %c0_i32_0 : i32, i32
  }
  func.func @transform_2(%arg0: i32) -> (i32, i32) {
    %c0_i32 = arith.constant 0 : i32
    %c0_i32_0 = arith.constant 0 : i32
    return %arg0, %c0_i32 : i32, i32
  }
  func.func @transform_3(%arg0: i32) -> (i32, i32) {
    %c0_i32 = arith.constant 0 : i32
    %c0_i32_0 = arith.constant 0 : i32
    %c0_i32_1 = arith.constant 0 : i32
    return %c0_i32, %c0_i32_0 : i32, i32
  }
  func.func @transform_4(%arg0: i32) -> (i32, i32) {
    %c0_i32 = arith.constant 0 : i32
    %c0_i32_0 = arith.constant 0 : i32
    %c0_i32_1 = arith.constant 0 : i32
    return %c0_i32, %c0_i32_0 : i32, i32
  }
}

module attributes {stable_mosaic.version = 11 : i64} {
  func.func @_bn_relu_kernel(%arg0: i32, %arg1: memref<128x128xf32, #tpu.memory_space<vmem>>, %arg2: memref<1x128xf32, #tpu.memory_space<vmem>>, %arg3: memref<1x128xf32, #tpu.memory_space<vmem>>, %arg4: memref<128x128xbf16, #tpu.memory_space<vmem>>) attributes {dimension_semantics = [#tpu.dimension_semantics<parallel>], iteration_bounds = array<i64: 1>, scalar_prefetch = 0 : i64, scratch_operands = 0 : i64, tpu.core_type = #tpu.core_type<tc>, window_params = [{transform_indices = @transform_0, window_bounds = array<i64: 128, 128>}, {pipeline_mode = #tpu.pipeline_mode<synchronous>, transform_indices = @transform_1, window_bounds = array<i64: 1, 128>}, {pipeline_mode = #tpu.pipeline_mode<synchronous>, transform_indices = @transform_2, window_bounds = array<i64: 1, 128>}, {transform_indices = @transform_3, window_bounds = array<i64: 128, 128>}]} {
    %c0 = arith.constant 0 : index
    %c0_0 = arith.constant 0 : index
    %0 = vector.load %arg1[%c0, %c0_0] : memref<128x128xf32, #tpu.memory_space<vmem>>, vector<128x128xf32>
    %c0_1 = arith.constant 0 : index
    %c0_2 = arith.constant 0 : index
    %1 = vector.load %arg2[%c0_1, %c0_2] : memref<1x128xf32, #tpu.memory_space<vmem>>, vector<1x128xf32>
    %2 = vector.broadcast %1 : vector<1x128xf32> to vector<128x128xf32>
    %3 = arith.mulf %0, %2 : vector<128x128xf32>
    %c0_3 = arith.constant 0 : index
    %c0_4 = arith.constant 0 : index
    %4 = vector.load %arg3[%c0_3, %c0_4] : memref<1x128xf32, #tpu.memory_space<vmem>>, vector<1x128xf32>
    %5 = vector.broadcast %4 : vector<1x128xf32> to vector<128x128xf32>
    %6 = arith.addf %3, %5 : vector<128x128xf32>
    %cst = arith.constant 0.000000e+00 : f32
    %7 = vector.broadcast %cst : f32 to vector<128x128xf32>
    %8 = arith.maximumf %6, %7 : vector<128x128xf32>
    %9 = arith.truncf %8 : vector<128x128xf32> to vector<128x128xbf16>
    %c0_5 = arith.constant 0 : index
    %c0_6 = arith.constant 0 : index
    %10 = vector.load %arg4[%c0_5, %c0_6] : memref<128x128xbf16, #tpu.memory_space<vmem>>, vector<128x128xbf16>
    tpu.vector_store %arg4[%c0_5, %c0_6], %9 {strides = array<i32>} : memref<128x128xbf16, #tpu.memory_space<vmem>>, vector<128x128xbf16>,
    return
  }
  func.func @transform_0(%arg0: i32) -> (i32, i32) {
    %c0_i32 = arith.constant 0 : i32
    %c0_i32_0 = arith.constant 0 : i32
    return %arg0, %c0_i32 : i32, i32
  }
  func.func @transform_1(%arg0: i32) -> (i32, i32) {
    %c0_i32 = arith.constant 0 : i32
    %c0_i32_0 = arith.constant 0 : i32
    %c0_i32_1 = arith.constant 0 : i32
    return %c0_i32, %c0_i32_0 : i32, i32
  }
  func.func @transform_2(%arg0: i32) -> (i32, i32) {
    %c0_i32 = arith.constant 0 : i32
    %c0_i32_0 = arith.constant 0 : i32
    %c0_i32_1 = arith.constant 0 : i32
    return %c0_i32, %c0_i32_0 : i32, i32
  }
  func.func @transform_3(%arg0: i32) -> (i32, i32) {
    %c0_i32 = arith.constant 0 : i32
    %c0_i32_0 = arith.constant 0 : i32
    return %arg0, %c0_i32 : i32, i32
  }
}

module attributes {stable_mosaic.version = 11 : i64} {
  func.func @_bn_shortcut_add_relu_kernel(%arg0: i32, %arg1: memref<128x128xf32, #tpu.memory_space<vmem>>, %arg2: memref<1x128xf32, #tpu.memory_space<vmem>>, %arg3: memref<1x128xf32, #tpu.memory_space<vmem>>, %arg4: memref<128x128xbf16, #tpu.memory_space<vmem>>, %arg5: memref<128x128xbf16, #tpu.memory_space<vmem>>, %arg6: memref<1x128xf32, #tpu.memory_space<vmem>>, %arg7: memref<128x128xf32, #tpu.memory_space<vmem>>) attributes {dimension_semantics = [#tpu.dimension_semantics<parallel>], iteration_bounds = array<i64: 1>, scalar_prefetch = 0 : i64, scratch_operands = 0 : i64, tpu.core_type = #tpu.core_type<tc>, window_params = [{transform_indices = @transform_0, window_bounds = array<i64: 128, 128>}, {pipeline_mode = #tpu.pipeline_mode<synchronous>, transform_indices = @transform_1, window_bounds = array<i64: 1, 128>}, {pipeline_mode = #tpu.pipeline_mode<synchronous>, transform_indices = @transform_2, window_bounds = array<i64: 1, 128>}, {transform_indices = @transform_3, window_bounds = array<i64: 128, 128>}, {pipeline_mode = #tpu.pipeline_mode<synchronous>, transform_indices = @transform_4, window_bounds = array<i64: 128, 128>}, {pipeline_mode = #tpu.pipeline_mode<synchronous>, transform_indices = @transform_5, window_bounds = array<i64: 1, 128>}, {transform_indices = @transform_6, window_bounds = array<i64: 128, 128>}]} {
    %c0 = arith.constant 0 : index
    %c0_0 = arith.constant 0 : index
    %0 = vector.load %arg1[%c0, %c0_0] : memref<128x128xf32, #tpu.memory_space<vmem>>, vector<128x128xf32>
    %c0_1 = arith.constant 0 : index
    %c0_2 = arith.constant 0 : index
    %1 = vector.load %arg2[%c0_1, %c0_2] : memref<1x128xf32, #tpu.memory_space<vmem>>, vector<1x128xf32>
    %2 = vector.broadcast %1 : vector<1x128xf32> to vector<128x128xf32>
    %3 = arith.mulf %0, %2 : vector<128x128xf32>
    %c0_3 = arith.constant 0 : index
    %c0_4 = arith.constant 0 : index
    %4 = vector.load %arg3[%c0_3, %c0_4] : memref<1x128xf32, #tpu.memory_space<vmem>>, vector<1x128xf32>
    %5 = vector.broadcast %4 : vector<1x128xf32> to vector<128x128xf32>
    %6 = arith.addf %3, %5 : vector<128x128xf32>
    %c0_5 = arith.constant 0 : index
    %c0_6 = arith.constant 0 : index
    %7 = vector.load %arg4[%c0_5, %c0_6] : memref<128x128xbf16, #tpu.memory_space<vmem>>, vector<128x128xbf16>
    %c0_7 = arith.constant 0 : index
    %c0_8 = arith.constant 0 : index
    %8 = vector.load %arg5[%c0_7, %c0_8] : memref<128x128xbf16, #tpu.memory_space<vmem>>, vector<128x128xbf16>
    %cst = arith.constant dense<0.000000e+00> : vector<128x128xf32>
    %9 = tpu.matmul %7, %8, %cst {dimension_numbers = #tpu.dot_dimension_numbers<[1], [0], [0], [1], [0, 0, 1, 1], [], []>} : vector<128x128xbf16>, vector<128x128xbf16>, vector<128x128xf32> -> vector<128x128xf32>
    %c0_9 = arith.constant 0 : index
    %c0_10 = arith.constant 0 : index
    %10 = vector.load %arg6[%c0_9, %c0_10] : memref<1x128xf32, #tpu.memory_space<vmem>>, vector<1x128xf32>
    %11 = vector.broadcast %10 : vector<1x128xf32> to vector<128x128xf32>
    %12 = arith.addf %9, %11 : vector<128x128xf32>
    %13 = arith.addf %6, %12 : vector<128x128xf32>
    %cst_11 = arith.constant 0.000000e+00 : f32
    %14 = vector.broadcast %cst_11 : f32 to vector<128x128xf32>
    %15 = arith.maximumf %13, %14 : vector<128x128xf32>
    %c0_12 = arith.constant 0 : index
    %c0_13 = arith.constant 0 : index
    %16 = vector.load %arg7[%c0_12, %c0_13] : memref<128x128xf32, #tpu.memory_space<vmem>>, vector<128x128xf32>
    tpu.vector_store %arg7[%c0_12, %c0_13], %15 {strides = array<i32>} : memref<128x128xf32, #tpu.memory_space<vmem>>, vector<128x128xf32>,
    return
  }
  func.func @transform_0(%arg0: i32) -> (i32, i32) {
    %c0_i32 = arith.constant 0 : i32
    %c0_i32_0 = arith.constant 0 : i32
    return %arg0, %c0_i32 : i32, i32
  }
  func.func @transform_1(%arg0: i32) -> (i32, i32) {
    %c0_i32 = arith.constant 0 : i32
    %c0_i32_0 = arith.constant 0 : i32
    %c0_i32_1 = arith.constant 0 : i32
    return %c0_i32, %c0_i32_0 : i32, i32
  }
  func.func @transform_2(%arg0: i32) -> (i32, i32) {
    %c0_i32 = arith.constant 0 : i32
    %c0_i32_0 = arith.constant 0 : i32
    %c0_i32_1 = arith.constant 0 : i32
    return %c0_i32, %c0_i32_0 : i32, i32
  }
  func.func @transform_3(%arg0: i32) -> (i32, i32) {
    %c0_i32 = arith.constant 0 : i32
    %c0_i32_0 = arith.constant 0 : i32
    return %arg0, %c0_i32 : i32, i32
  }
  func.func @transform_4(%arg0: i32) -> (i32, i32) {
    %c0_i32 = arith.constant 0 : i32
    %c0_i32_0 = arith.constant 0 : i32
    %c0_i32_1 = arith.constant 0 : i32
    return %c0_i32, %c0_i32_0 : i32, i32
  }
  func.func @transform_5(%arg0: i32) -> (i32, i32) {
    %c0_i32 = arith.constant 0 : i32
    %c0_i32_0 = arith.constant 0 : i32
    %c0_i32_1 = arith.constant 0 : i32
    return %c0_i32, %c0_i32_0 : i32, i32
  }
  func.func @transform_6(%arg0: i32) -> (i32, i32) {
    %c0_i32 = arith.constant 0 : i32
    %c0_i32_0 = arith.constant 0 : i32
    return %arg0, %c0_i32 : i32, i32
  }
}

</mosaic_0001>

<llo_original>
// kernel: residual_forward.5
$region0: #{residual_forward.5}
  #allocation0 [shape = 'u32[]', space=smem, size = 0x4, offset = 0x4, fixed_abs, tag = 'smem constant byte address 0x4 - core index']
  #allocation1 [shape = 'u32[144,128]{1,0:T(1,128)}', space=vmem, size = 0x12000, scoped, tag = 'internal scratch']
  %s0 = inlined_call_operand.vmem [shape: f32[128,128], index: 0, kind: input, shape index: {}]
  %s1 = inlined_call_operand.vmem [shape: f32[1,128], index: 1, kind: input, shape index: {}]
  %s2 = inlined_call_operand.vmem [shape: f32[1,128], index: 2, kind: input, shape index: {}]
  %s3 = inlined_call_operand.vmem [shape: bf16[128,128], index: 3, kind: output, shape index: {}]
  %s4 = sld [smem:[#allocation0]]
  $region22: #{residual_forward.5} parent=0
    _
  %s6 = ssub.s32 1, %s4
  %s7 = scalar_select 0, %s6, %s4
  // Predicated region
  $region2: #{residual_forward.5} parent=0 // pred_check
    _
  $region3: #{residual_forward.5} parent=0 // pred_check_branch
    %9 = sbr.rel (0) target = $region5
  $region4: #{residual_forward.5} parent=0 // pred_region
    _
  $region5: #{residual_forward.5} parent=0 // pred_fallthru
    _
  // Predicated region
  $region6: #{residual_forward.5} parent=0 // pred_check
    _
  $region7: #{residual_forward.5} parent=0 // pred_check_branch
    %11 = sbr.rel (0) target = $region9
  $region8: #{residual_forward.5} parent=0 // pred_region
    _
  $region9: #{residual_forward.5} parent=0 // pred_fallthru
    _
  // Predicated region
  $region10: #{residual_forward.5} parent=0 // pred_check
    _
  $region11: #{residual_forward.5} parent=0 // pred_check_branch
    %13 = sbr.rel (0) target = $region13
  $region12: #{residual_forward.5} parent=0 // pred_region
    _
  $region13: #{residual_forward.5} parent=0 // pred_fallthru
    _
  %v14 = vld [vmem:[%s0] sm:$0xff]
  %v15 = vld [vmem:[%s0 + $0x8] sm:$0xff]
  %v16 = vld [vmem:[%s0 + $0x10] sm:$0xff]
  %v17 = vld [vmem:[%s0 + $0x18] sm:$0xff]
  %v18 = vld [vmem:[%s0 + $0x20] sm:$0xff]
  %v19 = vld [vmem:[%s0 + $0x28] sm:$0xff]
  %v20 = vld [vmem:[%s0 + $0x30] sm:$0xff]
  %v21 = vld [vmem:[%s0 + $0x38] sm:$0xff]
  %v22 = vld [vmem:[%s0 + $0x40] sm:$0xff]
  %v23 = vld [vmem:[%s0 + $0x48] sm:$0xff]
  %v24 = vld [vmem:[%s0 + $0x50] sm:$0xff]
  %v25 = vld [vmem:[%s0 + $0x58] sm:$0xff]
  %v26 = vld [vmem:[%s0 + $0x60] sm:$0xff]
  %v27 = vld [vmem:[%s0 + $0x68] sm:$0xff]
  %v28 = vld [vmem:[%s0 + $0x70] sm:$0xff]
  %v29 = vld [vmem:[%s0 + $0x78] sm:$0xff]
  %v30 = vld [vmem:[%s1] sm:$0x1]
  %v32 = vlaneseq
  %v33 = vshrl.u32 %v32, 7
  %v34 = vsub.s32 0, %v33
  %v35 = vrot.slane %v30, %v34
  %v37 = vmul.f32 %v14, %v35
  %v38 = vmul.f32 %v15, %v35
  %v39 = vmul.f32 %v16, %v35
  %v40 = vmul.f32 %v17, %v35
  %v41 = vmul.f32 %v18, %v35
  %v42 = vmul.f32 %v19, %v35
  %v43 = vmul.f32 %v20, %v35
  %v44 = vmul.f32 %v21, %v35
  %v45 = vmul.f32 %v22, %v35
  %v46 = vmul.f32 %v23, %v35
  %v47 = vmul.f32 %v24, %v35
  %v48 = vmul.f32 %v25, %v35
  %v49 = vmul.f32 %v26, %v35
  %v50 = vmul.f32 %v27, %v35
  %v51 = vmul.f32 %v28, %v35
  %v52 = vmul.f32 %v29, %v35
  %v53 = vld [vmem:[%s2] sm:$0x1]
  %v55 = vlaneseq
  %v56 = vshrl.u32 %v55, 7
  %v57 = vsub.s32 0, %v56
  %v58 = vrot.slane %v53, %v57
  %v60 = vadd.f32 %v37, %v58
  %v61 = vadd.f32 %v38, %v58
  %v62 = vadd.f32 %v39, %v58
  %v63 = vadd.f32 %v40, %v58
  %v64 = vadd.f32 %v41, %v58
  %v65 = vadd.f32 %v42, %v58
  %v66 = vadd.f32 %v43, %v58
  %v67 = vadd.f32 %v44, %v58
  %v68 = vadd.f32 %v45, %v58
  %v69 = vadd.f32 %v46, %v58
  %v70 = vadd.f32 %v47, %v58
  %v71 = vadd.f32 %v48, %v58
  %v72 = vadd.f32 %v49, %v58
  %v73 = vadd.f32 %v50, %v58
  %v74 = vadd.f32 %v51, %v58
  %v75 = vadd.f32 %v52, %v58
  %v76 = vmax.f32 %v60, 0.0
  %v77 = vmax.f32 %v61, 0.0
  %v78 = vmax.f32 %v62, 0.0
  %v79 = vmax.f32 %v63, 0.0
  %v80 = vmax.f32 %v64, 0.0
  %v81 = vmax.f32 %v65, 0.0
  %v82 = vmax.f32 %v66, 0.0
  %v83 = vmax.f32 %v67, 0.0
  %v84 = vmax.f32 %v68, 0.0
  %v85 = vmax.f32 %v69, 0.0
  %v86 = vmax.f32 %v70, 0.0
  %v87 = vmax.f32 %v71, 0.0
  %v88 = vmax.f32 %v72, 0.0
  %v89 = vmax.f32 %v73, 0.0
  %v90 = vmax.f32 %v74, 0.0
  %v91 = vmax.f32 %v75, 0.0
  %v92 = vpack.c.bf16 %v77, %v76
  %v93 = vpack.c.bf16 %v79, %v78
  %v94 = vpack.c.bf16 %v81, %v80
  %v95 = vpack.c.bf16 %v83, %v82
  %v96 = vpack.c.bf16 %v85, %v84
  %v97 = vpack.c.bf16 %v87, %v86
  %v98 = vpack.c.bf16 %v89, %v88
  %v99 = vpack.c.bf16 %v91, %v90
  %v108 = vunpack.c.l.b16 %v92
  %v109 = vunpack.c.h.b16 %v92
  %v110 = vunpack.c.l.b16 %v93
  %v111 = vunpack.c.h.b16 %v93
  %v112 = vunpack.c.l.b16 %v94
  %v113 = vunpack.c.h.b16 %v94
  %v114 = vunpack.c.l.b16 %v95
  %v115 = vunpack.c.h.b16 %v95
  %v116 = vunpack.c.l.b16 %v96
  %v117 = vunpack.c.h.b16 %v96
  %v118 = vunpack.c.l.b16 %v97
  %v119 = vunpack.c.h.b16 %v97
  %v120 = vunpack.c.l.b16 %v98
  %v121 = vunpack.c.h.b16 %v98
  %v122 = vunpack.c.l.b16 %v99
  %v123 = vunpack.c.h.b16 %v99
  %v124 = vpack.c.b16 %v108, %v108
  %v125 = vpack.c.b16 %v109, %v109
  %v126 = vpack.c.b16 %v110, %v110
  %v127 = vpack.c.b16 %v111, %v111
  %v128 = vpack.c.b16 %v112, %v112
  %v129 = vpack.c.b16 %v113, %v113
  %v130 = vpack.c.b16 %v114, %v114
  %v131 = vpack.c.b16 %v115, %v115
  %v132 = vpack.c.b16 %v116, %v116
  %v133 = vpack.c.b16 %v117, %v117
  %v134 = vpack.c.b16 %v118, %v118
  %v135 = vpack.c.b16 %v119, %v119
  %v136 = vpack.c.b16 %v120, %v120
  %v137 = vpack.c.b16 %v121, %v121
  %v138 = vpack.c.b16 %v122, %v122
  %v139 = vpack.c.b16 %v123, %v123
  %156 = vst [vmem:[%s3] sm:$0xf] %v124
  %157 = vst [vmem:[%s3 + $0x4] sm:$0xf] %v125
  %158 = vst [vmem:[%s3 + $0x8] sm:$0xf] %v126
  %159 = vst [vmem:[%s3 + $0xc] sm:$0xf] %v127
  %160 = vst [vmem:[%s3 + $0x10] sm:$0xf] %v128
  %161 = vst [vmem:[%s3 + $0x14] sm:$0xf] %v129
  %162 = vst [vmem:[%s3 + $0x18] sm:$0xf] %v130
  %163 = vst [vmem:[%s3 + $0x1c] sm:$0xf] %v131
  %164 = vst [vmem:[%s3 + $0x20] sm:$0xf] %v132
  %165 = vst [vmem:[%s3 + $0x24] sm:$0xf] %v133
  %166 = vst [vmem:[%s3 + $0x28] sm:$0xf] %v134
  %167 = vst [vmem:[%s3 + $0x2c] sm:$0xf] %v135
  %168 = vst [vmem:[%s3 + $0x30] sm:$0xf] %v136
  %169 = vst [vmem:[%s3 + $0x34] sm:$0xf] %v137
  %170 = vst [vmem:[%s3 + $0x38] sm:$0xf] %v138
  %171 = vst [vmem:[%s3 + $0x3c] sm:$0xf] %v139
  // Predicated region
  $region14: #{residual_forward.5} parent=0 // pred_check
    _
  $region15: #{residual_forward.5} parent=0 // pred_check_branch
    %173 = sbr.rel (0) target = $region17
  $region16: #{residual_forward.5} parent=0 // pred_region
    _
  $region17: #{residual_forward.5} parent=0 // pred_fallthru
    _
  // Predicated region
  $region18: #{residual_forward.5} parent=0 // pred_check
    _
  $region19: #{residual_forward.5} parent=0 // pred_check_branch
    %175 = sbr.rel (0) target = $region21
  $region20: #{residual_forward.5} parent=0 // pred_region
    _
  $region21: #{residual_forward.5} parent=0 // pred_fallthru
    _

// kernel: residual_forward.4
$region0: #{residual_forward.4}
  #allocation0 [shape = 'u32[]', space=smem, size = 0x4, offset = 0x4, fixed_abs, tag = 'smem constant byte address 0x4 - core index']
  #allocation1 [shape = 'u32[144,128]{1,0:T(1,128)}', space=vmem, size = 0x12000, scoped, tag = 'internal scratch']
  %s0 = inlined_call_operand.vmem [shape: bf16[128,128], index: 0, kind: input, shape index: {}]
  %s1 = inlined_call_operand.vmem [shape: bf16[128,128], index: 1, kind: input, shape index: {}]
  %s2 = inlined_call_operand.vmem [shape: f32[128,128], index: 2, kind: output, shape index: {0}]
  %s3 = inlined_call_operand.vmem [shape: f32[1,128], index: 3, kind: output, shape index: {1}]
  %s4 = inlined_call_operand.vmem [shape: f32[1,128], index: 4, kind: output, shape index: {2}]
  %5 = xla_tuple %s2, %s3, %s4
  %s6 = sld [smem:[#allocation0]]
  $region38: #{residual_forward.4} parent=0
    _
  %s8 = ssub.s32 1, %s6
  %s9 = scalar_select 0, %s8, %s6
  // Predicated region
  $region2: #{residual_forward.4} parent=0 // pred_check
    _
  $region3: #{residual_forward.4} parent=0 // pred_check_branch
    %11 = sbr.rel (0) target = $region5
  $region4: #{residual_forward.4} parent=0 // pred_region
    _
  $region5: #{residual_forward.4} parent=0 // pred_fallthru
    _
  // Predicated region
  $region6: #{residual_forward.4} parent=0 // pred_check
    _
  $region7: #{residual_forward.4} parent=0 // pred_check_branch
    %13 = sbr.rel (0) target = $region9
  $region8: #{residual_forward.4} parent=0 // pred_region
    _
  $region9: #{residual_forward.4} parent=0 // pred_fallthru
    _
  %v15 = vld [vmem:[%s0] sm:$0xf]
  %v16 = vld [vmem:[%s0 + $0x4] sm:$0xf]
  %v17 = vld [vmem:[%s0 + $0x8] sm:$0xf]
  %v18 = vld [vmem:[%s0 + $0xc] sm:$0xf]
  %v19 = vld [vmem:[%s0 + $0x10] sm:$0xf]
  %v20 = vld [vmem:[%s0 + $0x14] sm:$0xf]
  %v21 = vld [vmem:[%s0 + $0x18] sm:$0xf]
  %v22 = vld [vmem:[%s0 + $0x1c] sm:$0xf]
  %v23 = vld [vmem:[%s0 + $0x20] sm:$0xf]
  %v24 = vld [vmem:[%s0 + $0x24] sm:$0xf]
  %v25 = vld [vmem:[%s0 + $0x28] sm:$0xf]
  %v26 = vld [vmem:[%s0 + $0x2c] sm:$0xf]
  %v27 = vld [vmem:[%s0 + $0x30] sm:$0xf]
  %v28 = vld [vmem:[%s0 + $0x34] sm:$0xf]
  %v29 = vld [vmem:[%s0 + $0x38] sm:$0xf]
  %v30 = vld [vmem:[%s0 + $0x3c] sm:$0xf]
  %v31 = vld [vmem:[%s1] sm:$0xf]
  %v32 = vld [vmem:[%s1 + $0x4] sm:$0xf]
  %v33 = vld [vmem:[%s1 + $0x8] sm:$0xf]
  %v34 = vld [vmem:[%s1 + $0xc] sm:$0xf]
  %v35 = vld [vmem:[%s1 + $0x10] sm:$0xf]
  %v36 = vld [vmem:[%s1 + $0x14] sm:$0xf]
  %v37 = vld [vmem:[%s1 + $0x18] sm:$0xf]
  %v38 = vld [vmem:[%s1 + $0x1c] sm:$0xf]
  %v39 = vld [vmem:[%s1 + $0x20] sm:$0xf]
  %v40 = vld [vmem:[%s1 + $0x24] sm:$0xf]
  %v41 = vld [vmem:[%s1 + $0x28] sm:$0xf]
  %v42 = vld [vmem:[%s1 + $0x2c] sm:$0xf]
  %v43 = vld [vmem:[%s1 + $0x30] sm:$0xf]
  %v44 = vld [vmem:[%s1 + $0x34] sm:$0xf]
  %v45 = vld [vmem:[%s1 + $0x38] sm:$0xf]
  %v46 = vld [vmem:[%s1 + $0x3c] sm:$0xf]
  %v63 = vunpack.c.l.b16 %v15
  %v64 = vunpack.c.l.b16 %v16
  %v65 = vunpack.c.l.b16 %v17
  %v66 = vunpack.c.l.b16 %v18
  %v67 = vunpack.c.l.b16 %v19
  %v68 = vunpack.c.l.b16 %v20
  %v69 = vunpack.c.l.b16 %v21
  %v70 = vunpack.c.l.b16 %v22
  %v71 = vunpack.c.l.b16 %v23
  %v72 = vunpack.c.l.b16 %v24
  %v73 = vunpack.c.l.b16 %v25
  %v74 = vunpack.c.l.b16 %v26
  %v75 = vunpack.c.l.b16 %v27
  %v76 = vunpack.c.l.b16 %v28
  %v77 = vunpack.c.l.b16 %v29
  %v78 = vunpack.c.l.b16 %v30
  %v79 = vpack.c.b16 %v64, %v63
  %v80 = vpack.c.b16 %v66, %v65
  %v81 = vpack.c.b16 %v68, %v67
  %v82 = vpack.c.b16 %v70, %v69
  %v83 = vpack.c.b16 %v72, %v71
  %v84 = vpack.c.b16 %v74, %v73
  %v85 = vpack.c.b16 %v76, %v75
  %v86 = vpack.c.b16 %v78, %v77
  %v111 = vunpack.c.l.b16 %v31
  %v112 = vunpack.c.l.b16 %v32
  %v113 = vunpack.c.l.b16 %v33
  %v114 = vunpack.c.l.b16 %v34
  %v115 = vunpack.c.l.b16 %v35
  %v116 = vunpack.c.l.b16 %v36
  %v117 = vunpack.c.l.b16 %v37
  %v118 = vunpack.c.l.b16 %v38
  %v119 = vunpack.c.l.b16 %v39
  %v120 = vunpack.c.l.b16 %v40
  %v121 = vunpack.c.l.b16 %v41
  %v122 = vunpack.c.l.b16 %v42
  %v123 = vunpack.c.l.b16 %v43
  %v124 = vunpack.c.l.b16 %v44
  %v125 = vunpack.c.l.b16 %v45
  %v126 = vunpack.c.l.b16 %v46
  %v127 = vpack.c.b16 %v112, %v111
  %v128 = vpack.c.b16 %v114, %v113
  %v129 = vpack.c.b16 %v116, %v115
  %v130 = vpack.c.b16 %v118, %v117
  %v131 = vpack.c.b16 %v120, %v119
  %v132 = vpack.c.b16 %v122, %v121
  %v133 = vpack.c.b16 %v124, %v123
  %v134 = vpack.c.b16 %v126, %v125
  %143 = vmatprep.subr.bf16.mxu0 0
  %144 = vmatpush1.bf16.msra.mxu0 %v127
  %145 = vmatprep.subr.bf16.mxu0 0
  %146 = vmatpush1.bf16.msra.mxu0 %v128
  %147 = vmatprep.subr.bf16.mxu0 0
  %148 = vmatpush1.bf16.msra.mxu0 %v129
  %149 = vmatprep.subr.bf16.mxu0 0
  %150 = vmatpush1.bf16.msra.mxu0 %v130
  %151 = vmatprep.subr.bf16.mxu0 0
  %152 = vmatpush1.bf16.msra.mxu0 %v131
  %153 = vmatprep.subr.bf16.mxu0 0
  %154 = vmatpush1.bf16.msra.mxu0 %v132
  %155 = vmatprep.subr.bf16.mxu0 0
  %156 = vmatpush1.bf16.msra.mxu0 %v133
  %157 = vmatprep.subr.bf16.mxu0 0
  %158 = vmatpush1.bf16.msra.mxu0 %v134
  %159 = vmatprep.subr.bf16.mxu0 0
  %160 = vmatpush1.bf16.msra.mxu0 0
  %161 = vmatprep.subr.bf16.mxu0 0
  %162 = vmatpush1.bf16.msra.mxu0 0
  %163 = vmatprep.subr.bf16.mxu0 0
  %164 = vmatpush1.bf16.msra.mxu0 0
  %165 = vmatprep.subr.bf16.mxu0 0
  %166 = vmatpush1.bf16.msra.mxu0 0
  %167 = vmatprep.subr.bf16.mxu0 0
  %168 = vmatpush1.bf16.msra.mxu0 0
  %169 = vmatprep.subr.bf16.mxu0 0
  %170 = vmatpush1.bf16.msra.mxu0 0
  %171 = vmatprep.subr.bf16.mxu0 0
  %172 = vmatpush1.bf16.msra.mxu0 0
  %173 = vmatprep.subr.bf16.mxu0 0
  %174 = vmatpush1.bf16.msra.mxu0 0
  %175 = vmatprep.mubr.bf16.mxu0 0
  %176 = vmatmul.mubr.bf16.gmra.mrb[0].mxu0 %v79
  %v177 = vpop.f32.mrb[0].mxu0
  %v178 = vadd.f32 0.0, %v177
  %v179 = vpop.f32.mrb[0].mxu0
  %v180 = vpop.f32.mrb[0].mxu0
  %v181 = vadd.f32 0.0, %v180
  %v182 = vpop.f32.mrb[0].mxu0
  %183 = vmatprep.mubr.bf16.mxu0 0
  %184 = vmatmul.mubr.bf16.gmra.mrb[0].mxu0 %v80
  %v185 = vpop.f32.mrb[0].mxu0
  %v186 = vadd.f32 0.0, %v185
  %v187 = vpop.f32.mrb[0].mxu0
  %v188 = vpop.f32.mrb[0].mxu0
  %v189 = vadd.f32 0.0, %v188
  %v190 = vpop.f32.mrb[0].mxu0
  %191 = vmatprep.mubr.bf16.mxu0 0
  %192 = vmatmul.mubr.bf16.gmra.mrb[0].mxu0 %v81
  %v193 = vpop.f32.mrb[0].mxu0
  %v194 = vadd.f32 0.0, %v193
  %v195 = vpop.f32.mrb[0].mxu0
  %v196 = vpop.f32.mrb[0].mxu0
  %v197 = vadd.f32 0.0, %v196
  %v198 = vpop.f32.mrb[0].mxu0
  %199 = vmatprep.mubr.bf16.mxu0 0
  %200 = vmatmul.mubr.bf16.gmra.mrb[0].mxu0 %v82
  %v201 = vpop.f32.mrb[0].mxu0
  %v202 = vadd.f32 0.0, %v201
  %v203 = vpop.f32.mrb[0].mxu0
  %v204 = vpop.f32.mrb[0].mxu0
  %v205 = vadd.f32 0.0, %v204
  %v206 = vpop.f32.mrb[0].mxu0
  %207 = vmatprep.mubr.bf16.mxu0 0
  %208 = vmatmul.mubr.bf16.gmra.mrb[0].mxu0 %v83
  %v209 = vpop.f32.mrb[0].mxu0
  %v210 = vadd.f32 0.0, %v209
  %v211 = vpop.f32.mrb[0].mxu0
  %v212 = vpop.f32.mrb[0].mxu0
  %v213 = vadd.f32 0.0, %v212
  %v214 = vpop.f32.mrb[0].mxu0
  %215 = vmatprep.mubr.bf16.mxu0 0
  %216 = vmatmul.mubr.bf16.gmra.mrb[0].mxu0 %v84
  %v217 = vpop.f32.mrb[0].mxu0
  %v218 = vadd.f32 0.0, %v217
  %v219 = vpop.f32.mrb[0].mxu0
  %v220 = vpop.f32.mrb[0].mxu0
  %v221 = vadd.f32 0.0, %v220
  %v222 = vpop.f32.mrb[0].mxu0
  %223 = vmatprep.mubr.bf16.mxu0 0
  %224 = vmatmul.mubr.bf16.gmra.mrb[0].mxu0 %v85
  %v225 = vpop.f32.mrb[0].mxu0
  %v226 = vadd.f32 0.0, %v225
  %v227 = vpop.f32.mrb[0].mxu0
  %v228 = vpop.f32.mrb[0].mxu0
  %v229 = vadd.f32 0.0, %v228
  %v230 = vpop.f32.mrb[0].mxu0
  %231 = vmatprep.mubr.bf16.mxu0 0
  %232 = vmatmul.mubr.bf16.gmra.mrb[0].mxu0 %v86
  %v233 = vpop.f32.mrb[0].mxu0
  %v234 = vadd.f32 0.0, %v233
  %v235 = vpop.f32.mrb[0].mxu0
  %v236 = vpop.f32.mrb[0].mxu0
  %v237 = vadd.f32 0.0, %v236
  %v238 = vpop.f32.mrb[0].mxu0
  %239 = vdwg.mxu0
  %240 = vst [vmem:[%s2] sm:$0xff] %v178
  %241 = vst [vmem:[%s2 + $0x8] sm:$0xff] %v181
  %242 = vst [vmem:[%s2 + $0x10] sm:$0xff] %v186
  %243 = vst [vmem:[%s2 + $0x18] sm:$0xff] %v189
  %244 = vst [vmem:[%s2 + $0x20] sm:$0xff] %v194
  %245 = vst [vmem:[%s2 + $0x28] sm:$0xff] %v197
  %246 = vst [vmem:[%s2 + $0x30] sm:$0xff] %v202
  %247 = vst [vmem:[%s2 + $0x38] sm:$0xff] %v205
  %248 = vst [vmem:[%s2 + $0x40] sm:$0xff] %v210
  %249 = vst [vmem:[%s2 + $0x48] sm:$0xff] %v213
  %250 = vst [vmem:[%s2 + $0x50] sm:$0xff] %v218
  %251 = vst [vmem:[%s2 + $0x58] sm:$0xff] %v221
  %252 = vst [vmem:[%s2 + $0x60] sm:$0xff] %v226
  %253 = vst [vmem:[%s2 + $0x68] sm:$0xff] %v229
  %254 = vst [vmem:[%s2 + $0x70] sm:$0xff] %v234
  %255 = vst [vmem:[%s2 + $0x78] sm:$0xff] %v237
  %p256 = scmp.eq.s32.totalorder 0, 0
  // Predicated region
  $region10: #{residual_forward.4} parent=0 // pred_check
    %p257 = pneg %p256
  $region11: #{residual_forward.4} parent=0 // pred_check_branch
    %259 = sbr.rel (%p257) target = $region13
  $region12: #{residual_forward.4} parent=0 // pred_region
    %260 = vst [vmem:[%s3] sm:$0x1] 0.0
    %261 = vst [vmem:[%s4] sm:$0x1] 0.0
  $region13: #{residual_forward.4} parent=0 // pred_fallthru
    _
  %v262 = vld [vmem:[%s3] sm:$0x1]
  %v263 = vadd.f32 %v178, %v181
  %v264 = vadd.f32 %v263, %v186
  %v265 = vadd.f32 %v264, %v189
  %v266 = vadd.f32 %v265, %v194
  %v267 = vadd.f32 %v266, %v197
  %v268 = vadd.f32 %v267, %v202
  %v269 = vadd.f32 %v268, %v205
  %v270 = vadd.f32 %v269, %v210
  %v271 = vadd.f32 %v270, %v213
  %v272 = vadd.f32 %v271, %v218
  %v273 = vadd.f32 %v272, %v221
  %v274 = vadd.f32 %v273, %v226
  %v275 = vadd.f32 %v274, %v229
  %v276 = vadd.f32 %v275, %v234
  %v277 = vadd.f32 %v276, %v237
  %v278 = vrot.slane %v277, 4
  %v279 = vadd.f32 %v277, %v278
  %v280 = vrot.slane %v279, 2
  %v281 = vadd.f32 %v279, %v280
  %v282 = vrot.slane %v281, 1
  %v283 = vadd.f32 %v281, %v282
  %v284 = vadd.f32 %v262, %v283
  %285 = vst [vmem:[%s3] sm:$0x1] %v284
  %v286 = vld [vmem:[%s4] sm:$0x1]
  %v287 = vmul.f32 %v178, %v178
  %v288 = vmul.f32 %v181, %v181
  %v289 = vmul.f32 %v186, %v186
  %v290 = vmul.f32 %v189, %v189
  %v291 = vmul.f32 %v194, %v194
  %v292 = vmul.f32 %v197, %v197
  %v293 = vmul.f32 %v202, %v202
  %v294 = vmul.f32 %v205, %v205
  %v295 = vmul.f32 %v210, %v210
  %v296 = vmul.f32 %v213, %v213
  %v297 = vmul.f32 %v218, %v218
  %v298 = vmul.f32 %v221, %v221
  %v299 = vmul.f32 %v226, %v226
  %v300 = vmul.f32 %v229, %v229
  %v301 = vmul.f32 %v234, %v234
  %v302 = vmul.f32 %v237, %v237
  %v303 = vadd.f32 %v287, %v288
  %v304 = vadd.f32 %v303, %v289
  %v305 = vadd.f32 %v304, %v290
  %v306 = vadd.f32 %v305, %v291
  %v307 = vadd.f32 %v306, %v292
  %v308 = vadd.f32 %v307, %v293
  %v309 = vadd.f32 %v308, %v294
  %v310 = vadd.f32 %v309, %v295
  %v311 = vadd.f32 %v310, %v296
  %v312 = vadd.f32 %v311, %v297
  %v313 = vadd.f32 %v312, %v298
  %v314 = vadd.f32 %v313, %v299
  %v315 = vadd.f32 %v314, %v300
  %v316 = vadd.f32 %v315, %v301
  %v317 = vadd.f32 %v316, %v302
  %v318 = vrot.slane %v317, 4
  %v319 = vadd.f32 %v317, %v318
  %v320 = vrot.slane %v319, 2
  %v321 = vadd.f32 %v319, %v320
  %v322 = vrot.slane %v321, 1
  %v323 = vadd.f32 %v321, %v322
  %v324 = vadd.f32 %v286, %v323
  %325 = vst [vmem:[%s4] sm:$0x1] %v324
  // Predicated region
  $region14: #{residual_forward.4} parent=0 // pred_check
    _
  $region15: #{residual_forward.4} parent=0 // pred_check_branch
    %327 = sbr.rel (0) target = $region17
  $region16: #{residual_forward.4} parent=0 // pred_region
    _
  $region17: #{residual_forward.4} parent=0 // pred_fallthru
    _
  // Predicated region
  $region18: #{residual_forward.4} parent=0 // pred_check
    _
  $region19: #{residual_forward.4} parent=0 // pred_check_branch
    %329 = sbr.rel (0) target = $region21
  $region20: #{residual_forward.4} parent=0 // pred_region
    _
  $region21: #{residual_forward.4} parent=0 // pred_fallthru
    _
  // Predicated region
  $region22: #{residual_forward.4} parent=0 // pred_check
    _
  $region23: #{residual_forward.4} parent=0 // pred_check_branch
    %331 = sbr.rel (0) target = $region25
  $region24: #{residual_forward.4} parent=0 // pred_region
    _
  $region25: #{residual_forward.4} parent=0 // pred_fallthru
    _
  // Predicated region
  $region26: #{residual_forward.4} parent=0 // pred_check
    _
  $region27: #{residual_forward.4} parent=0 // pred_check_branch
    %333 = sbr.rel (0) target = $region29
  $region28: #{residual_forward.4} parent=0 // pred_region
    _
  $region29: #{residual_forward.4} parent=0 // pred_fallthru
    _
  // Predicated region
  $region30: #{residual_forward.4} parent=0 // pred_check
    _
  $region31: #{residual_forward.4} parent=0 // pred_check_branch
    %335 = sbr.rel (0) target = $region33
  $region32: #{residual_forward.4} parent=0 // pred_region
    _
  $region33: #{residual_forward.4} parent=0 // pred_fallthru
    _
  // Predicated region
  $region34: #{residual_forward.4} parent=0 // pred_check
    _
  $region35: #{residual_forward.4} parent=0 // pred_check_branch
    %337 = sbr.rel (0) target = $region37
  $region36: #{residual_forward.4} parent=0 // pred_region
    _
  $region37: #{residual_forward.4} parent=0 // pred_fallthru
    _

// kernel: residual_forward.7
$region0: #{residual_forward.7}
  #allocation0 [shape = 'u32[]', space=smem, size = 0x4, offset = 0x4, fixed_abs, tag = 'smem constant byte address 0x4 - core index']
  #allocation1 [shape = 'u32[144,128]{1,0:T(1,128)}', space=vmem, size = 0x12000, scoped, tag = 'internal scratch']
  %s0 = inlined_call_operand.vmem [shape: f32[128,128], index: 0, kind: input, shape index: {}]
  %s1 = inlined_call_operand.vmem [shape: f32[1,128], index: 1, kind: input, shape index: {}]
  %s2 = inlined_call_operand.vmem [shape: f32[1,128], index: 2, kind: input, shape index: {}]
  %s3 = inlined_call_operand.vmem [shape: bf16[128,128], index: 3, kind: input, shape index: {}]
  %s4 = inlined_call_operand.vmem [shape: bf16[128,128], index: 4, kind: input, shape index: {}]
  %s5 = inlined_call_operand.vmem [shape: f32[1,128], index: 5, kind: input, shape index: {}]
  %s6 = inlined_call_operand.vmem [shape: f32[128,128], index: 6, kind: output, shape index: {}]
  %s7 = sld [smem:[#allocation0]]
  $region34: #{residual_forward.7} parent=0
    _
  %s9 = ssub.s32 1, %s7
  %s10 = scalar_select 0, %s9, %s7
  // Predicated region
  $region2: #{residual_forward.7} parent=0 // pred_check
    _
  $region3: #{residual_forward.7} parent=0 // pred_check_branch
    %12 = sbr.rel (0) target = $region5
  $region4: #{residual_forward.7} parent=0 // pred_region
    _
  $region5: #{residual_forward.7} parent=0 // pred_fallthru
    _
  // Predicated region
  $region6: #{residual_forward.7} parent=0 // pred_check
    _
  $region7: #{residual_forward.7} parent=0 // pred_check_branch
    %14 = sbr.rel (0) target = $region9
  $region8: #{residual_forward.7} parent=0 // pred_region
    _
  $region9: #{residual_forward.7} parent=0 // pred_fallthru
    _
  // Predicated region
  $region10: #{residual_forward.7} parent=0 // pred_check
    _
  $region11: #{residual_forward.7} parent=0 // pred_check_branch
    %16 = sbr.rel (0) target = $region13
  $region12: #{residual_forward.7} parent=0 // pred_region
    _
  $region13: #{residual_forward.7} parent=0 // pred_fallthru
    _
  // Predicated region
  $region14: #{residual_forward.7} parent=0 // pred_check
    _
  $region15: #{residual_forward.7} parent=0 // pred_check_branch
    %18 = sbr.rel (0) target = $region17
  $region16: #{residual_forward.7} parent=0 // pred_region
    _
  $region17: #{residual_forward.7} parent=0 // pred_fallthru
    _
  // Predicated region
  $region18: #{residual_forward.7} parent=0 // pred_check
    _
  $region19: #{residual_forward.7} parent=0 // pred_check_branch
    %20 = sbr.rel (0) target = $region21
  $region20: #{residual_forward.7} parent=0 // pred_region
    _
  $region21: #{residual_forward.7} parent=0 // pred_fallthru
    _
  // Predicated region
  $region22: #{residual_forward.7} parent=0 // pred_check
    _
  $region23: #{residual_forward.7} parent=0 // pred_check_branch
    %22 = sbr.rel (0) target = $region25
  $region24: #{residual_forward.7} parent=0 // pred_region
    _
  $region25: #{residual_forward.7} parent=0 // pred_fallthru
    _
  %v24 = vld [vmem:[%s0] sm:$0xff]
  %v25 = vld [vmem:[%s0 + $0x8] sm:$0xff]
  %v26 = vld [vmem:[%s0 + $0x10] sm:$0xff]
  %v27 = vld [vmem:[%s0 + $0x18] sm:$0xff]
  %v28 = vld [vmem:[%s0 + $0x20] sm:$0xff]
  %v29 = vld [vmem:[%s0 + $0x28] sm:$0xff]
  %v30 = vld [vmem:[%s0 + $0x30] sm:$0xff]
  %v31 = vld [vmem:[%s0 + $0x38] sm:$0xff]
  %v32 = vld [vmem:[%s0 + $0x40] sm:$0xff]
  %v33 = vld [vmem:[%s0 + $0x48] sm:$0xff]
  %v34 = vld [vmem:[%s0 + $0x50] sm:$0xff]
  %v35 = vld [vmem:[%s0 + $0x58] sm:$0xff]
  %v36 = vld [vmem:[%s0 + $0x60] sm:$0xff]
  %v37 = vld [vmem:[%s0 + $0x68] sm:$0xff]
  %v38 = vld [vmem:[%s0 + $0x70] sm:$0xff]
  %v39 = vld [vmem:[%s0 + $0x78] sm:$0xff]
  %v40 = vld [vmem:[%s1] sm:$0x1]
  %v42 = vlaneseq
  %v43 = vshrl.u32 %v42, 7
  %v44 = vsub.s32 0, %v43
  %v45 = vrot.slane %v40, %v44
  %v47 = vmul.f32 %v24, %v45
  %v48 = vmul.f32 %v25, %v45
  %v49 = vmul.f32 %v26, %v45
  %v50 = vmul.f32 %v27, %v45
  %v51 = vmul.f32 %v28, %v45
  %v52 = vmul.f32 %v29, %v45
  %v53 = vmul.f32 %v30, %v45
  %v54 = vmul.f32 %v31, %v45
  %v55 = vmul.f32 %v32, %v45
  %v56 = vmul.f32 %v33, %v45
  %v57 = vmul.f32 %v34, %v45
  %v58 = vmul.f32 %v35, %v45
  %v59 = vmul.f32 %v36, %v45
  %v60 = vmul.f32 %v37, %v45
  %v61 = vmul.f32 %v38, %v45
  %v62 = vmul.f32 %v39, %v45
  %v63 = vld [vmem:[%s2] sm:$0x1]
  %v65 = vlaneseq
  %v66 = vshrl.u32 %v65, 7
  %v67 = vsub.s32 0, %v66
  %v68 = vrot.slane %v63, %v67
  %v70 = vadd.f32 %v47, %v68
  %v71 = vadd.f32 %v48, %v68
  %v72 = vadd.f32 %v49, %v68
  %v73 = vadd.f32 %v50, %v68
  %v74 = vadd.f32 %v51, %v68
  %v75 = vadd.f32 %v52, %v68
  %v76 = vadd.f32 %v53, %v68
  %v77 = vadd.f32 %v54, %v68
  %v78 = vadd.f32 %v55, %v68
  %v79 = vadd.f32 %v56, %v68
  %v80 = vadd.f32 %v57, %v68
  %v81 = vadd.f32 %v58, %v68
  %v82 = vadd.f32 %v59, %v68
  %v83 = vadd.f32 %v60, %v68
  %v84 = vadd.f32 %v61, %v68
  %v85 = vadd.f32 %v62, %v68
  %v86 = vld [vmem:[%s3] sm:$0xf]
  %v87 = vld [vmem:[%s3 + $0x4] sm:$0xf]
  %v88 = vld [vmem:[%s3 + $0x8] sm:$0xf]
  %v89 = vld [vmem:[%s3 + $0xc] sm:$0xf]
  %v90 = vld [vmem:[%s3 + $0x10] sm:$0xf]
  %v91 = vld [vmem:[%s3 + $0x14] sm:$0xf]
  %v92 = vld [vmem:[%s3 + $0x18] sm:$0xf]
  %v93 = vld [vmem:[%s3 + $0x1c] sm:$0xf]
  %v94 = vld [vmem:[%s3 + $0x20] sm:$0xf]
  %v95 = vld [vmem:[%s3 + $0x24] sm:$0xf]
  %v96 = vld [vmem:[%s3 + $0x28] sm:$0xf]
  %v97 = vld [vmem:[%s3 + $0x2c] sm:$0xf]
  %v98 = vld [vmem:[%s3 + $0x30] sm:$0xf]
  %v99 = vld [vmem:[%s3 + $0x34] sm:$0xf]
  %v100 = vld [vmem:[%s3 + $0x38] sm:$0xf]
  %v101 = vld [vmem:[%s3 + $0x3c] sm:$0xf]
  %v102 = vld [vmem:[%s4] sm:$0xf]
  %v103 = vld [vmem:[%s4 + $0x4] sm:$0xf]
  %v104 = vld [vmem:[%s4 + $0x8] sm:$0xf]
  %v105 = vld [vmem:[%s4 + $0xc] sm:$0xf]
  %v106 = vld [vmem:[%s4 + $0x10] sm:$0xf]
  %v107 = vld [vmem:[%s4 + $0x14] sm:$0xf]
  %v108 = vld [vmem:[%s4 + $0x18] sm:$0xf]
  %v109 = vld [vmem:[%s4 + $0x1c] sm:$0xf]
  %v110 = vld [vmem:[%s4 + $0x20] sm:$0xf]
  %v111 = vld [vmem:[%s4 + $0x24] sm:$0xf]
  %v112 = vld [vmem:[%s4 + $0x28] sm:$0xf]
  %v113 = vld [vmem:[%s4 + $0x2c] sm:$0xf]
  %v114 = vld [vmem:[%s4 + $0x30] sm:$0xf]
  %v115 = vld [vmem:[%s4 + $0x34] sm:$0xf]
  %v116 = vld [vmem:[%s4 + $0x38] sm:$0xf]
  %v117 = vld [vmem:[%s4 + $0x3c] sm:$0xf]
  %v118 = vld [vmem:[%s5] sm:$0x1]
  %v120 = vlaneseq
  %v121 = vshrl.u32 %v120, 7
  %v122 = vsub.s32 0, %v121
  %v123 = vrot.slane %v118, %v122
  %v141 = vunpack.c.l.b16 %v86
  %v142 = vunpack.c.l.b16 %v87
  %v143 = vunpack.c.l.b16 %v88
  %v144 = vunpack.c.l.b16 %v89
  %v145 = vunpack.c.l.b16 %v90
  %v146 = vunpack.c.l.b16 %v91
  %v147 = vunpack.c.l.b16 %v92
  %v148 = vunpack.c.l.b16 %v93
  %v149 = vunpack.c.l.b16 %v94
  %v150 = vunpack.c.l.b16 %v95
  %v151 = vunpack.c.l.b16 %v96
  %v152 = vunpack.c.l.b16 %v97
  %v153 = vunpack.c.l.b16 %v98
  %v154 = vunpack.c.l.b16 %v99
  %v155 = vunpack.c.l.b16 %v100
  %v156 = vunpack.c.l.b16 %v101
  %v157 = vpack.c.b16 %v142, %v141
  %v158 = vpack.c.b16 %v144, %v143
  %v159 = vpack.c.b16 %v146, %v145
  %v160 = vpack.c.b16 %v148, %v147
  %v161 = vpack.c.b16 %v150, %v149
  %v162 = vpack.c.b16 %v152, %v151
  %v163 = vpack.c.b16 %v154, %v153
  %v164 = vpack.c.b16 %v156, %v155
  %v189 = vunpack.c.l.b16 %v102
  %v190 = vunpack.c.l.b16 %v103
  %v191 = vunpack.c.l.b16 %v104
  %v192 = vunpack.c.l.b16 %v105
  %v193 = vunpack.c.l.b16 %v106
  %v194 = vunpack.c.l.b16 %v107
  %v195 = vunpack.c.l.b16 %v108
  %v196 = vunpack.c.l.b16 %v109
  %v197 = vunpack.c.l.b16 %v110
  %v198 = vunpack.c.l.b16 %v111
  %v199 = vunpack.c.l.b16 %v112
  %v200 = vunpack.c.l.b16 %v113
  %v201 = vunpack.c.l.b16 %v114
  %v202 = vunpack.c.l.b16 %v115
  %v203 = vunpack.c.l.b16 %v116
  %v204 = vunpack.c.l.b16 %v117
  %v205 = vpack.c.b16 %v190, %v189
  %v206 = vpack.c.b16 %v192, %v191
  %v207 = vpack.c.b16 %v194, %v193
  %v208 = vpack.c.b16 %v196, %v195
  %v209 = vpack.c.b16 %v198, %v197
  %v210 = vpack.c.b16 %v200, %v199
  %v211 = vpack.c.b16 %v202, %v201
  %v212 = vpack.c.b16 %v204, %v203
  %221 = vmatprep.subr.bf16.mxu0 0
  %222 = vmatpush1.bf16.msra.mxu0 %v205
  %223 = vmatprep.subr.bf16.mxu0 0
  %224 = vmatpush1.bf16.msra.mxu0 %v206
  %225 = vmatprep.subr.bf16.mxu0 0
  %226 = vmatpush1.bf16.msra.mxu0 %v207
  %227 = vmatprep.subr.bf16.mxu0 0
  %228 = vmatpush1.bf16.msra.mxu0 %v208
  %229 = vmatprep.subr.bf16.mxu0 0
  %230 = vmatpush1.bf16.msra.mxu0 %v209
  %231 = vmatprep.subr.bf16.mxu0 0
  %232 = vmatpush1.bf16.msra.mxu0 %v210
  %233 = vmatprep.subr.bf16.mxu0 0
  %234 = vmatpush1.bf16.msra.mxu0 %v211
  %235 = vmatprep.subr.bf16.mxu0 0
  %236 = vmatpush1.bf16.msra.mxu0 %v212
  %237 = vmatprep.subr.bf16.mxu0 0
  %238 = vmatpush1.bf16.msra.mxu0 0
  %239 = vmatprep.subr.bf16.mxu0 0
  %240 = vmatpush1.bf16.msra.mxu0 0
  %241 = vmatprep.subr.bf16.mxu0 0
  %242 = vmatpush1.bf16.msra.mxu0 0
  %243 = vmatprep.subr.bf16.mxu0 0
  %244 = vmatpush1.bf16.msra.mxu0 0
  %245 = vmatprep.subr.bf16.mxu0 0
  %246 = vmatpush1.bf16.msra.mxu0 0
  %247 = vmatprep.subr.bf16.mxu0 0
  %248 = vmatpush1.bf16.msra.mxu0 0
  %249 = vmatprep.subr.bf16.mxu0 0
  %250 = vmatpush1.bf16.msra.mxu0 0
  %251 = vmatprep.subr.bf16.mxu0 0
  %252 = vmatpush1.bf16.msra.mxu0 0
  %253 = vmatprep.mubr.bf16.mxu0 0
  %254 = vmatmul.mubr.bf16.gmra.mrb[0].mxu0 %v157
  %v255 = vpop.f32.mrb[0].mxu0
  %v256 = vadd.f32 %v123, %v255
  %v257 = vpop.f32.mrb[0].mxu0
  %v258 = vpop.f32.mrb[0].mxu0
  %v259 = vadd.f32 %v123, %v258
  %v260 = vpop.f32.mrb[0].mxu0
  %261 = vmatprep.mubr.bf16.mxu0 0
  %262 = vmatmul.mubr.bf16.gmra.mrb[0].mxu0 %v158
  %v263 = vpop.f32.mrb[0].mxu0
  %v264 = vadd.f32 %v123, %v263
  %v265 = vpop.f32.mrb[0].mxu0
  %v266 = vpop.f32.mrb[0].mxu0
  %v267 = vadd.f32 %v123, %v266
  %v268 = vpop.f32.mrb[0].mxu0
  %269 = vmatprep.mubr.bf16.mxu0 0
  %270 = vmatmul.mubr.bf16.gmra.mrb[0].mxu0 %v159
  %v271 = vpop.f32.mrb[0].mxu0
  %v272 = vadd.f32 %v123, %v271
  %v273 = vpop.f32.mrb[0].mxu0
  %v274 = vpop.f32.mrb[0].mxu0
  %v275 = vadd.f32 %v123, %v274
  %v276 = vpop.f32.mrb[0].mxu0
  %277 = vmatprep.mubr.bf16.mxu0 0
  %278 = vmatmul.mubr.bf16.gmra.mrb[0].mxu0 %v160
  %v279 = vpop.f32.mrb[0].mxu0
  %v280 = vadd.f32 %v123, %v279
  %v281 = vpop.f32.mrb[0].mxu0
  %v282 = vpop.f32.mrb[0].mxu0
  %v283 = vadd.f32 %v123, %v282
  %v284 = vpop.f32.mrb[0].mxu0
  %285 = vmatprep.mubr.bf16.mxu0 0
  %286 = vmatmul.mubr.bf16.gmra.mrb[0].mxu0 %v161
  %v287 = vpop.f32.mrb[0].mxu0
  %v288 = vadd.f32 %v123, %v287
  %v289 = vpop.f32.mrb[0].mxu0
  %v290 = vpop.f32.mrb[0].mxu0
  %v291 = vadd.f32 %v123, %v290
  %v292 = vpop.f32.mrb[0].mxu0
  %293 = vmatprep.mubr.bf16.mxu0 0
  %294 = vmatmul.mubr.bf16.gmra.mrb[0].mxu0 %v162
  %v295 = vpop.f32.mrb[0].mxu0
  %v296 = vadd.f32 %v123, %v295
  %v297 = vpop.f32.mrb[0].mxu0
  %v298 = vpop.f32.mrb[0].mxu0
  %v299 = vadd.f32 %v123, %v298
  %v300 = vpop.f32.mrb[0].mxu0
  %301 = vmatprep.mubr.bf16.mxu0 0
  %302 = vmatmul.mubr.bf16.gmra.mrb[0].mxu0 %v163
  %v303 = vpop.f32.mrb[0].mxu0
  %v304 = vadd.f32 %v123, %v303
  %v305 = vpop.f32.mrb[0].mxu0
  %v306 = vpop.f32.mrb[0].mxu0
  %v307 = vadd.f32 %v123, %v306
  %v308 = vpop.f32.mrb[0].mxu0
  %309 = vmatprep.mubr.bf16.mxu0 0
  %310 = vmatmul.mubr.bf16.gmra.mrb[0].mxu0 %v164
  %v311 = vpop.f32.mrb[0].mxu0
  %v312 = vadd.f32 %v123, %v311
  %v313 = vpop.f32.mrb[0].mxu0
  %v314 = vpop.f32.mrb[0].mxu0
  %v315 = vadd.f32 %v123, %v314
  %v316 = vpop.f32.mrb[0].mxu0
  %317 = vdwg.mxu0
  %v318 = vadd.f32 %v70, %v256
  %v319 = vadd.f32 %v71, %v259
  %v320 = vadd.f32 %v72, %v264
  %v321 = vadd.f32 %v73, %v267
  %v322 = vadd.f32 %v74, %v272
  %v323 = vadd.f32 %v75, %v275
  %v324 = vadd.f32 %v76, %v280
  %v325 = vadd.f32 %v77, %v283
  %v326 = vadd.f32 %v78, %v288
  %v327 = vadd.f32 %v79, %v291
  %v328 = vadd.f32 %v80, %v296
  %v329 = vadd.f32 %v81, %v299
  %v330 = vadd.f32 %v82, %v304
  %v331 = vadd.f32 %v83, %v307
  %v332 = vadd.f32 %v84, %v312
  %v333 = vadd.f32 %v85, %v315
  %v334 = vmax.f32 %v318, 0.0
  %v335 = vmax.f32 %v319, 0.0
  %v336 = vmax.f32 %v320, 0.0
  %v337 = vmax.f32 %v321, 0.0
  %v338 = vmax.f32 %v322, 0.0
  %v339 = vmax.f32 %v323, 0.0
  %v340 = vmax.f32 %v324, 0.0
  %v341 = vmax.f32 %v325, 0.0
  %v342 = vmax.f32 %v326, 0.0
  %v343 = vmax.f32 %v327, 0.0
  %v344 = vmax.f32 %v328, 0.0
  %v345 = vmax.f32 %v329, 0.0
  %v346 = vmax.f32 %v330, 0.0
  %v347 = vmax.f32 %v331, 0.0
  %v348 = vmax.f32 %v332, 0.0
  %v349 = vmax.f32 %v333, 0.0
  %350 = vst [vmem:[%s6] sm:$0xff] %v334
  %351 = vst [vmem:[%s6 + $0x8] sm:$0xff] %v335
  %352 = vst [vmem:[%s6 + $0x10] sm:$0xff] %v336
  %353 = vst [vmem:[%s6 + $0x18] sm:$0xff] %v337
  %354 = vst [vmem:[%s6 + $0x20] sm:$0xff] %v338
  %355 = vst [vmem:[%s6 + $0x28] sm:$0xff] %v339
  %356 = vst [vmem:[%s6 + $0x30] sm:$0xff] %v340
  %357 = vst [vmem:[%s6 + $0x38] sm:$0xff] %v341
  %358 = vst [vmem:[%s6 + $0x40] sm:$0xff] %v342
  %359 = vst [vmem:[%s6 + $0x48] sm:$0xff] %v343
  %360 = vst [vmem:[%s6 + $0x50] sm:$0xff] %v344
  %361 = vst [vmem:[%s6 + $0x58] sm:$0xff] %v345
  %362 = vst [vmem:[%s6 + $0x60] sm:$0xff] %v346
  %363 = vst [vmem:[%s6 + $0x68] sm:$0xff] %v347
  %364 = vst [vmem:[%s6 + $0x70] sm:$0xff] %v348
  %365 = vst [vmem:[%s6 + $0x78] sm:$0xff] %v349
  // Predicated region
  $region26: #{residual_forward.7} parent=0 // pred_check
    _
  $region27: #{residual_forward.7} parent=0 // pred_check_branch
    %367 = sbr.rel (0) target = $region29
  $region28: #{residual_forward.7} parent=0 // pred_region
    _
  $region29: #{residual_forward.7} parent=0 // pred_fallthru
    _
  // Predicated region
  $region30: #{residual_forward.7} parent=0 // pred_check
    _
  $region31: #{residual_forward.7} parent=0 // pred_check_branch
    %369 = sbr.rel (0) target = $region33
  $region32: #{residual_forward.7} parent=0 // pred_region
    _
  $region33: #{residual_forward.7} parent=0 // pred_fallthru
    _

</llo_original>
